<compile_context>
chip_gen: v7x
topology: tpu7x:2x2x1
jax: 0.10.0
libtpu: 0.0.40
codegen_flags: <defaults>
</compile_context>

<pallas_src>
import functools

import jax
import jax.numpy as jnp
from jax.experimental import pallas as pl
from jax.experimental.pallas import tpu as pltpu


def _encoder_kernel(x_ref, w1_ref, b1_ref, w2_ref, b2_ref, w3_ref, b3_ref,
                    o_ref):
    cdt = w1_ref.dtype                      # compute dtype (bf16 by default)
    # Cast x on-chip: avoids a separate wrapper cast pass over the dominant
    # HBM stream.  MXU accumulates in f32; bias + ReLU epilogue stays f32.
    x = x_ref[...].astype(cdt)
    h = jnp.dot(x, w1_ref[...], preferred_element_type=jnp.float32)
    h = jnp.maximum(h + b1_ref[...], 0.0)
    h = jnp.dot(h.astype(cdt), w2_ref[...], preferred_element_type=jnp.float32)
    h = jnp.maximum(h + b2_ref[...], 0.0)
    h = jnp.dot(h.astype(cdt), w3_ref[...], preferred_element_type=jnp.float32)
    h = jnp.maximum(h + b3_ref[...], 0.0)
    o_ref[...] = h.astype(o_ref.dtype)


def _round_up(n, m):
    return ((n + m - 1) // m) * m


@functools.lru_cache(maxsize=1)
def _tensorcores_per_chip():
    """Best-effort count of TensorCores sharing the grid's parallel axis."""
    try:
        kind = jax.devices()[0].device_kind.lower()
    except Exception:
        return 1
    if "lite" in kind or "v5e" in kind or "v6" in kind:
        return 1                      # v5e / v6e: one TensorCore per device
    if any(tag in kind for tag in ("v7", "v4", "v5p", "v5")):
        return 2                      # v7x / megacore: two TensorCores
    return 1


def _choose_block_b(batch, block_b, num_cores):
    """Batch tile: as big as allowed (amortize ~0.35us/step overhead), rounded
    to 16 rows (bf16 sublane packing).  On 2-TC chips round the step count up
    to a multiple of the core count so the `parallel` axis splits evenly."""
    bb = max(16, min(_round_up(block_b, 16), _round_up(batch, 16)))
    if num_cores > 1 and batch > bb:
        steps = _round_up(pl.cdiv(batch, bb), num_cores)
        bb = max(16, _round_up(pl.cdiv(batch, steps), 16))
    return bb


@functools.partial(jax.jit,
                   static_argnames=("block_b", "compute_dtype", "out_dtype"))
def encoder_forward(x, params, *, block_b=4096, compute_dtype=jnp.bfloat16,
                    out_dtype=None):
    """x: (B, input_size) in the caller's dtype.
    params: dict of weights (in,out) and biases (1,out); ideally already
    prepared via prepare_params (weights in compute_dtype, biases f32)."""
    w1, b1 = params["w1"], params["b1"]
    w2, b2 = params["w2"], params["b2"]
    w3, b3 = params["w3"], params["b3"]

    B, D = x.shape
    H1, H2, L = w1.shape[1], w2.shape[1], w3.shape[1]
    out_dtype = compute_dtype if out_dtype is None else out_dtype

    # No-ops when prepare_params was used; otherwise a cheap one-time cast of
    # the tiny weight tensors.  x is NOT cast here (done on-chip).
    w1 = w1.astype(compute_dtype)
    w2 = w2.astype(compute_dtype)
    w3 = w3.astype(compute_dtype)
    b1 = b1.astype(jnp.float32)
    b2 = b2.astype(jnp.float32)
    b3 = b3.astype(jnp.float32)

    bb = _choose_block_b(B, block_b, _tensorcores_per_chip())
    grid = (pl.cdiv(B, bb),)   # partial last block is masked by Pallas on store

    out = pl.pallas_call(
        _encoder_kernel,
        out_shape=jax.ShapeDtypeStruct((B, L), out_dtype),
        grid_spec=pltpu.PrefetchScalarGridSpec(
            num_scalar_prefetch=0,
            grid=grid,
            in_specs=[
                pl.BlockSpec((bb, D), lambda i: (i, 0)),    # x tile (streamed)
                pl.BlockSpec((D, H1), lambda i: (0, 0)),    # w1 (grid-invariant)
                pl.BlockSpec((1, H1), lambda i: (0, 0)),    # b1
                pl.BlockSpec((H1, H2), lambda i: (0, 0)),   # w2
                pl.BlockSpec((1, H2), lambda i: (0, 0)),    # b2
                pl.BlockSpec((H2, L), lambda i: (0, 0)),    # w3
                pl.BlockSpec((1, L), lambda i: (0, 0)),     # b3
            ],
            out_specs=pl.BlockSpec((bb, L), lambda i: (i, 0)),
        ),
        compiler_params=pltpu.CompilerParams(
            dimension_semantics=("parallel",)),
    )(x, w1, b1, w2, b2, w3, b3)
    return out


def init_params(key, input_size, latent_space_size):
    """Deterministic init mimicking nn.Linear default (uniform +/- 1/sqrt(fan_in))."""
    dims = [(input_size, input_size // 2),
            (input_size // 2, input_size // 4),
            (input_size // 4, latent_space_size)]
    params = {}
    for idx, (fan_in, fan_out) in enumerate(dims, start=1):
        key, kw, kb = jax.random.split(key, 3)
        bound = 1.0 / jnp.sqrt(float(fan_in))
        params[f"w{idx}"] = jax.random.uniform(
            kw, (fan_in, fan_out), jnp.float32, minval=-bound, maxval=bound)
        params[f"b{idx}"] = jax.random.uniform(
            kb, (1, fan_out), jnp.float32, minval=-bound, maxval=bound)
    return params


def prepare_params(params, compute_dtype=jnp.bfloat16):
    """One-time cast: weights -> compute dtype, biases -> f32 (outside jit)."""
    out = {}
    for i in (1, 2, 3):
        out[f"w{i}"] = params[f"w{i}"].astype(compute_dtype)
        out[f"b{i}"] = params[f"b{i}"].astype(jnp.float32)
    return out


def encoder_reference(x, params, compute_dtype=jnp.float32, out_dtype=None):
    """Pure-JAX reference mirroring the kernel's cast/accumulate strategy."""
    out_dtype = compute_dtype if out_dtype is None else out_dtype
    h = x.astype(compute_dtype)
    for i in (1, 2, 3):
        w = params[f"w{i}"].astype(compute_dtype)
        b = params[f"b{i}"].astype(jnp.float32)
        h = jnp.maximum(jnp.dot(h, w, preferred_element_type=jnp.float32) + b, 0.0)
        if i < 3:
            h = h.astype(compute_dtype)
    return h.astype(out_dtype)


if __name__ == "__main__":
    input_size = 128            # -> hidden sizes 64, 32
    latent_space_size = 16
    batch = 200                 # deliberately NOT a multiple of the tile (masked last block)

    key = jax.random.PRNGKey(0)
    key, kx = jax.random.split(key)
    x = jax.random.normal(kx, (batch, input_size), jnp.float32)
    params = init_params(key, input_size, latent_space_size)
    params_c = prepare_params(params)      # one-time weight/bias cast, outside jit

    out = encoder_forward(x, params_c)     # bf16 compute, bf16 out (default)
    out = jax.block_until_ready(out)

    assert out.shape == (batch, latent_space_size)
    assert out.dtype == jnp.bfloat16

    out_f32 = out.astype(jnp.float32)
    # Tight check vs a reference with identical casts; loose check vs pure f32.
    ref_same = encoder_reference(
        x, params, compute_dtype=jnp.bfloat16,
        out_dtype=jnp.bfloat16).astype(jnp.float32)
    ref_f32 = encoder_reference(x, params, compute_dtype=jnp.float32,
                                out_dtype=jnp.float32)
    assert jnp.allclose(out_f32, ref_same, atol=1e-2, rtol=1e-2), \
        "mismatch vs bf16 reference"
    assert jnp.allclose(out_f32, ref_f32, atol=6e-2, rtol=6e-2), \
        "mismatch vs f32 reference"

    print("KERNEL_OK")
</pallas_src>

<mosaic_0001>
module attributes {stable_mosaic.version = 11 : i64} {
  func.func @_encoder_kernel(%arg0: i32, %arg1: memref<208x128xf32, #tpu.memory_space<vmem>>, %arg2: memref<128x64xbf16, #tpu.memory_space<vmem>>, %arg3: memref<1x64xf32, #tpu.memory_space<vmem>>, %arg4: memref<64x32xbf16, #tpu.memory_space<vmem>>, %arg5: memref<1x32xf32, #tpu.memory_space<vmem>>, %arg6: memref<32x16xbf16, #tpu.memory_space<vmem>>, %arg7: memref<1x16xf32, #tpu.memory_space<vmem>>, %arg8: memref<208x16xbf16, #tpu.memory_space<vmem>>) attributes {dimension_semantics = [#tpu.dimension_semantics<parallel>], iteration_bounds = array<i64: 1>, scalar_prefetch = 0 : i64, scratch_operands = 0 : i64, tpu.core_type = #tpu.core_type<tc>, window_params = [{transform_indices = @transform_0, window_bounds = array<i64: 208, 128>}, {pipeline_mode = #tpu.pipeline_mode<synchronous>, transform_indices = @transform_1, window_bounds = array<i64: 128, 64>}, {pipeline_mode = #tpu.pipeline_mode<synchronous>, transform_indices = @transform_2, window_bounds = array<i64: 1, 64>}, {pipeline_mode = #tpu.pipeline_mode<synchronous>, transform_indices = @transform_3, window_bounds = array<i64: 64, 32>}, {pipeline_mode = #tpu.pipeline_mode<synchronous>, transform_indices = @transform_4, window_bounds = array<i64: 1, 32>}, {pipeline_mode = #tpu.pipeline_mode<synchronous>, transform_indices = @transform_5, window_bounds = array<i64: 32, 16>}, {pipeline_mode = #tpu.pipeline_mode<synchronous>, transform_indices = @transform_6, window_bounds = array<i64: 1, 16>}, {transform_indices = @transform_7, window_bounds = array<i64: 208, 16>}]} {
    %c0 = arith.constant 0 : index
    %c0_0 = arith.constant 0 : index
    %0 = vector.load %arg1[%c0, %c0_0] : memref<208x128xf32, #tpu.memory_space<vmem>>, vector<208x128xf32>
    %1 = arith.truncf %0 : vector<208x128xf32> to vector<208x128xbf16>
    %c0_1 = arith.constant 0 : index
    %c0_2 = arith.constant 0 : index
    %2 = vector.load %arg2[%c0_1, %c0_2] : memref<128x64xbf16, #tpu.memory_space<vmem>>, vector<128x64xbf16>
    %cst = arith.constant dense<0.000000e+00> : vector<208x64xf32>
    %3 = tpu.matmul %1, %2, %cst {dimension_numbers = #tpu.dot_dimension_numbers<[1], [0], [0], [1], [0, 0, 1, 1], [], []>} : vector<208x128xbf16>, vector<128x64xbf16>, vector<208x64xf32> -> vector<208x64xf32>
    %c0_3 = arith.constant 0 : index
    %c0_4 = arith.constant 0 : index
    %4 = vector.load %arg3[%c0_3, %c0_4] : memref<1x64xf32, #tpu.memory_space<vmem>>, vector<1x64xf32>
    %5 = vector.broadcast %4 : vector<1x64xf32> to vector<208x64xf32>
    %6 = arith.addf %3, %5 : vector<208x64xf32>
    %cst_5 = arith.constant 0.000000e+00 : f32
    %7 = vector.broadcast %cst_5 : f32 to vector<208x64xf32>
    %8 = arith.maximumf %6, %7 : vector<208x64xf32>
    %9 = arith.truncf %8 : vector<208x64xf32> to vector<208x64xbf16>
    %c0_6 = arith.constant 0 : index
    %c0_7 = arith.constant 0 : index
    %10 = vector.load %arg4[%c0_6, %c0_7] : memref<64x32xbf16, #tpu.memory_space<vmem>>, vector<64x32xbf16>
    %cst_8 = arith.constant dense<0.000000e+00> : vector<208x32xf32>
    %11 = tpu.matmul %9, %10, %cst_8 {dimension_numbers = #tpu.dot_dimension_numbers<[1], [0], [0], [1], [0, 0, 1, 1], [], []>} : vector<208x64xbf16>, vector<64x32xbf16>, vector<208x32xf32> -> vector<208x32xf32>
    %c0_9 = arith.constant 0 : index
    %c0_10 = arith.constant 0 : index
    %12 = vector.load %arg5[%c0_9, %c0_10] : memref<1x32xf32, #tpu.memory_space<vmem>>, vector<1x32xf32>
    %13 = vector.broadcast %12 : vector<1x32xf32> to vector<208x32xf32>
    %14 = arith.addf %11, %13 : vector<208x32xf32>
    %cst_11 = arith.constant 0.000000e+00 : f32
    %15 = vector.broadcast %cst_11 : f32 to vector<208x32xf32>
    %16 = arith.maximumf %14, %15 : vector<208x32xf32>
    %17 = arith.truncf %16 : vector<208x32xf32> to vector<208x32xbf16>
    %c0_12 = arith.constant 0 : index
    %c0_13 = arith.constant 0 : index
    %18 = vector.load %arg6[%c0_12, %c0_13] : memref<32x16xbf16, #tpu.memory_space<vmem>>, vector<32x16xbf16>
    %cst_14 = arith.constant dense<0.000000e+00> : vector<208x16xf32>
    %19 = tpu.matmul %17, %18, %cst_14 {dimension_numbers = #tpu.dot_dimension_numbers<[1], [0], [0], [1], [0, 0, 1, 1], [], []>} : vector<208x32xbf16>, vector<32x16xbf16>, vector<208x16xf32> -> vector<208x16xf32>
    %c0_15 = arith.constant 0 : index
    %c0_16 = arith.constant 0 : index
    %20 = vector.load %arg7[%c0_15, %c0_16] : memref<1x16xf32, #tpu.memory_space<vmem>>, vector<1x16xf32>
    %21 = vector.broadcast %20 : vector<1x16xf32> to vector<208x16xf32>
    %22 = arith.addf %19, %21 : vector<208x16xf32>
    %cst_17 = arith.constant 0.000000e+00 : f32
    %23 = vector.broadcast %cst_17 : f32 to vector<208x16xf32>
    %24 = arith.maximumf %22, %23 : vector<208x16xf32>
    %25 = arith.truncf %24 : vector<208x16xf32> to vector<208x16xbf16>
    %c0_18 = arith.constant 0 : index
    %c0_19 = arith.constant 0 : index
    %26 = vector.load %arg8[%c0_18, %c0_19] : memref<208x16xbf16, #tpu.memory_space<vmem>>, vector<208x16xbf16>
    tpu.vector_store %arg8[%c0_18, %c0_19], %25 {strides = array<i32>} : memref<208x16xbf16, #tpu.memory_space<vmem>>, vector<208x16xbf16>,
    return
  }
  func.func @transform_0(%arg0: i32) -> (i32, i32) {
    %c0_i32 = arith.constant 0 : i32
    %c0_i32_0 = arith.constant 0 : i32
    return %arg0, %c0_i32 : i32, i32
  }
  func.func @transform_1(%arg0: i32) -> (i32, i32) {
    %c0_i32 = arith.constant 0 : i32
    %c0_i32_0 = arith.constant 0 : i32
    %c0_i32_1 = arith.constant 0 : i32
    return %c0_i32, %c0_i32_0 : i32, i32
  }
  func.func @transform_2(%arg0: i32) -> (i32, i32) {
    %c0_i32 = arith.constant 0 : i32
    %c0_i32_0 = arith.constant 0 : i32
    %c0_i32_1 = arith.constant 0 : i32
    return %c0_i32, %c0_i32_0 : i32, i32
  }
  func.func @transform_3(%arg0: i32) -> (i32, i32) {
    %c0_i32 = arith.constant 0 : i32
    %c0_i32_0 = arith.constant 0 : i32
    %c0_i32_1 = arith.constant 0 : i32
    return %c0_i32, %c0_i32_0 : i32, i32
  }
  func.func @transform_4(%arg0: i32) -> (i32, i32) {
    %c0_i32 = arith.constant 0 : i32
    %c0_i32_0 = arith.constant 0 : i32
    %c0_i32_1 = arith.constant 0 : i32
    return %c0_i32, %c0_i32_0 : i32, i32
  }
  func.func @transform_5(%arg0: i32) -> (i32, i32) {
    %c0_i32 = arith.constant 0 : i32
    %c0_i32_0 = arith.constant 0 : i32
    %c0_i32_1 = arith.constant 0 : i32
    return %c0_i32, %c0_i32_0 : i32, i32
  }
  func.func @transform_6(%arg0: i32) -> (i32, i32) {
    %c0_i32 = arith.constant 0 : i32
    %c0_i32_0 = arith.constant 0 : i32
    %c0_i32_1 = arith.constant 0 : i32
    return %c0_i32, %c0_i32_0 : i32, i32
  }
  func.func @transform_7(%arg0: i32) -> (i32, i32) {
    %c0_i32 = arith.constant 0 : i32
    %c0_i32_0 = arith.constant 0 : i32
    return %arg0, %c0_i32 : i32, i32
  }
}

</mosaic_0001>

<llo_original>
// kernel: encoder_forward.1
$region0: #{encoder_forward.1}
  #allocation0 [shape = 'u32[]', space=smem, size = 0x4, offset = 0x4, fixed_abs, tag = 'smem constant byte address 0x4 - core index']
  #allocation1 [shape = 'u32[144,128]{1,0:T(1,128)}', space=vmem, size = 0x12000, scoped, tag = 'internal scratch']
  %s0 = inlined_call_operand.hbm [shape: f32[200,128], index: 0, kind: input, shape index: {}]
  %s1 = inlined_call_operand.vmem [shape: bf16[128,64], index: 1, kind: input, shape index: {}]
  %s2 = inlined_call_operand.vmem [shape: f32[1,64], index: 2, kind: input, shape index: {}]
  %s3 = inlined_call_operand.vmem [shape: bf16[64,32], index: 3, kind: input, shape index: {}]
  %s4 = inlined_call_operand.vmem [shape: f32[1,32], index: 4, kind: input, shape index: {}]
  %s5 = inlined_call_operand.vmem [shape: bf16[32,16], index: 5, kind: input, shape index: {}]
  %s6 = inlined_call_operand.vmem [shape: f32[1,16], index: 6, kind: input, shape index: {}]
  %s7 = inlined_call_operand.vmem [shape: bf16[200,16], index: 7, kind: output, shape index: {}]
  %s8 = sld [smem:[#allocation0]]
  $region79: #{encoder_forward.1} parent=0
    _
  %s10 = ssub.s32 1, %s8
  %s11 = scalar_select 0, %s10, %s8
  $region1: #{encoder_forward.1} parent=0
    #allocation2 [shape = 'u8[106496]{0}', space=vmem, size = 0x1a000, scoped, tag = 'input window, operand 0, single buffered']
    #allocation3 [shape = 's32[1]{0}', space=sflag, size = 0x4, scoped, tag = 'scoped memory for encoder_forward.1']
    #allocation4 [shape = 'u8[53248]{0}', space=vmem, size = 0xd000, scoped, tag = 'output window, operand 0, single buffered']
    %12 = vsyncpa [#allocation3], 0
    // Predicated region
    $region2: #{encoder_forward.1} parent=1 // pred_check
      _
    $region3: #{encoder_forward.1} parent=1 // pred_check_branch
      %14 = sbr.rel (0) target = $region5
    $region4: #{encoder_forward.1} parent=1 // pred_region
      %s16 = ssub.s32 3328, 3200
      %17 = vsyncadd [#allocation3], %s16
      %s18 = sshll.u32 [#allocation2], 4
      %s19 = int_to_ptr.vmem [resolvable:$true] %s18
      %24 = dma.hbm_to_vmem [thread:$0]  %s0, 3200, %s19, [#allocation3], 128, 128, 8
    $region5: #{encoder_forward.1} parent=1 // pred_fallthru
      _
    // Predicated region
    $region6: #{encoder_forward.1} parent=1 // pred_check
      _
    $region7: #{encoder_forward.1} parent=1 // pred_check_branch
      %26 = sbr.rel (0) target = $region9
    $region8: #{encoder_forward.1} parent=1 // pred_region
      _
    $region9: #{encoder_forward.1} parent=1 // pred_fallthru
      _
    // Predicated region
    $region10: #{encoder_forward.1} parent=1 // pred_check
      _
    $region11: #{encoder_forward.1} parent=1 // pred_check_branch
      %28 = sbr.rel (0) target = $region13
    $region12: #{encoder_forward.1} parent=1 // pred_region
      _
    $region13: #{encoder_forward.1} parent=1 // pred_fallthru
      _
    // Predicated region
    $region14: #{encoder_forward.1} parent=1 // pred_check
      _
    $region15: #{encoder_forward.1} parent=1 // pred_check_branch
      %30 = sbr.rel (0) target = $region17
    $region16: #{encoder_forward.1} parent=1 // pred_region
      _
    $region17: #{encoder_forward.1} parent=1 // pred_fallthru
      _
    // Predicated region
    $region18: #{encoder_forward.1} parent=1 // pred_check
      _
    $region19: #{encoder_forward.1} parent=1 // pred_check_branch
      %32 = sbr.rel (0) target = $region21
    $region20: #{encoder_forward.1} parent=1 // pred_region
      _
    $region21: #{encoder_forward.1} parent=1 // pred_fallthru
      _
    // Predicated region
    $region22: #{encoder_forward.1} parent=1 // pred_check
      _
    $region23: #{encoder_forward.1} parent=1 // pred_check_branch
      %34 = sbr.rel (0) target = $region25
    $region24: #{encoder_forward.1} parent=1 // pred_region
      _
    $region25: #{encoder_forward.1} parent=1 // pred_fallthru
      _
    // Predicated region
    $region26: #{encoder_forward.1} parent=1 // pred_check
      _
    $region27: #{encoder_forward.1} parent=1 // pred_check_branch
      %36 = sbr.rel (0) target = $region29
    $region28: #{encoder_forward.1} parent=1 // pred_region
      _
    $region29: #{encoder_forward.1} parent=1 // pred_fallthru
      _
    // Predicated region
    $region30: #{encoder_forward.1} parent=1 // pred_check
      _
    $region31: #{encoder_forward.1} parent=1 // pred_check_branch
      %38 = sbr.rel (0) target = $region33
    $region32: #{encoder_forward.1} parent=1 // pred_region
      %39 = dma.done [#allocation3], 3328
    $region33: #{encoder_forward.1} parent=1 // pred_fallthru
      _
    %v41 = vld [vmem:[#allocation2] sm:$0xff]
    %v42 = vld [vmem:[#allocation2 + $0x8] sm:$0xff]
    %v43 = vld [vmem:[#allocation2 + $0x10] sm:$0xff]
    %v44 = vld [vmem:[#allocation2 + $0x18] sm:$0xff]
    %v45 = vld [vmem:[#allocation2 + $0x20] sm:$0xff]
    %v46 = vld [vmem:[#allocation2 + $0x28] sm:$0xff]
    %v47 = vld [vmem:[#allocation2 + $0x30] sm:$0xff]
    %v48 = vld [vmem:[#allocation2 + $0x38] sm:$0xff]
    %v49 = vld [vmem:[#allocation2 + $0x40] sm:$0xff]
    %v50 = vld [vmem:[#allocation2 + $0x48] sm:$0xff]
    %v51 = vld [vmem:[#allocation2 + $0x50] sm:$0xff]
    %v52 = vld [vmem:[#allocation2 + $0x58] sm:$0xff]
    %v53 = vld [vmem:[#allocation2 + $0x60] sm:$0xff]
    %v54 = vld [vmem:[#allocation2 + $0x68] sm:$0xff]
    %v55 = vld [vmem:[#allocation2 + $0x70] sm:$0xff]
    %v56 = vld [vmem:[#allocation2 + $0x78] sm:$0xff]
    %v57 = vld [vmem:[#allocation2 + $0x80] sm:$0xff]
    %v58 = vld [vmem:[#allocation2 + $0x88] sm:$0xff]
    %v59 = vld [vmem:[#allocation2 + $0x90] sm:$0xff]
    %v60 = vld [vmem:[#allocation2 + $0x98] sm:$0xff]
    %v61 = vld [vmem:[#allocation2 + $0xa0] sm:$0xff]
    %v62 = vld [vmem:[#allocation2 + $0xa8] sm:$0xff]
    %v63 = vld [vmem:[#allocation2 + $0xb0] sm:$0xff]
    %v64 = vld [vmem:[#allocation2 + $0xb8] sm:$0xff]
    %v65 = vld [vmem:[#allocation2 + $0xc0] sm:$0xff]
    %v66 = vld [vmem:[#allocation2 + $0xc8] sm:$0xff]
    %v67 = vpack.c.bf16 %v42, %v41
    %v68 = vpack.c.bf16 %v44, %v43
    %v69 = vpack.c.bf16 %v46, %v45
    %v70 = vpack.c.bf16 %v48, %v47
    %v71 = vpack.c.bf16 %v50, %v49
    %v72 = vpack.c.bf16 %v52, %v51
    %v73 = vpack.c.bf16 %v54, %v53
    %v74 = vpack.c.bf16 %v56, %v55
    %v75 = vpack.c.bf16 %v58, %v57
    %v76 = vpack.c.bf16 %v60, %v59
    %v77 = vpack.c.bf16 %v62, %v61
    %v78 = vpack.c.bf16 %v64, %v63
    %v79 = vpack.c.bf16 %v66, %v65
    %v80 = vld [vmem:[%s1] sm:$0xf]
    %v81 = vld [vmem:[%s1 + $0x4] sm:$0xf]
    %v82 = vld [vmem:[%s1 + $0x8] sm:$0xf]
    %v83 = vld [vmem:[%s1 + $0xc] sm:$0xf]
    %v84 = vld [vmem:[%s1 + $0x10] sm:$0xf]
    %v85 = vld [vmem:[%s1 + $0x14] sm:$0xf]
    %v86 = vld [vmem:[%s1 + $0x18] sm:$0xf]
    %v87 = vld [vmem:[%s1 + $0x1c] sm:$0xf]
    %v88 = vld [vmem:[%s1 + $0x20] sm:$0xf]
    %v89 = vld [vmem:[%s1 + $0x24] sm:$0xf]
    %v90 = vld [vmem:[%s1 + $0x28] sm:$0xf]
    %v91 = vld [vmem:[%s1 + $0x2c] sm:$0xf]
    %v92 = vld [vmem:[%s1 + $0x30] sm:$0xf]
    %v93 = vld [vmem:[%s1 + $0x34] sm:$0xf]
    %v94 = vld [vmem:[%s1 + $0x38] sm:$0xf]
    %v95 = vld [vmem:[%s1 + $0x3c] sm:$0xf]
    %v96 = vld [vmem:[%s2] sm:$0x1]
    %v98 = vlaneseq
    %v99 = vshrl.u32 %v98, 7
    %v100 = vsub.s32 0, %v99
    %v101 = vrot.slane %v96, %v100
    %v119 = vunpack.c.l.b16 %v80
    %v120 = vunpack.c.l.b16 %v81
    %v121 = vunpack.c.l.b16 %v82
    %v122 = vunpack.c.l.b16 %v83
    %v123 = vunpack.c.l.b16 %v84
    %v124 = vunpack.c.l.b16 %v85
    %v125 = vunpack.c.l.b16 %v86
    %v126 = vunpack.c.l.b16 %v87
    %v127 = vunpack.c.l.b16 %v88
    %v128 = vunpack.c.l.b16 %v89
    %v129 = vunpack.c.l.b16 %v90
    %v130 = vunpack.c.l.b16 %v91
    %v131 = vunpack.c.l.b16 %v92
    %v132 = vunpack.c.l.b16 %v93
    %v133 = vunpack.c.l.b16 %v94
    %v134 = vunpack.c.l.b16 %v95
    %v135 = vpack.c.b16 %v120, %v119
    %v136 = vpack.c.b16 %v122, %v121
    %v137 = vpack.c.b16 %v124, %v123
    %v138 = vpack.c.b16 %v126, %v125
    %v139 = vpack.c.b16 %v128, %v127
    %v140 = vpack.c.b16 %v130, %v129
    %v141 = vpack.c.b16 %v132, %v131
    %v142 = vpack.c.b16 %v134, %v133
    %151 = vmatprep.subr.bf16.mxu0 0
    %152 = vmatpush1.bf16.msra.mxu0 %v135
    %153 = vmatprep.subr.bf16.mxu0 0
    %154 = vmatpush1.bf16.msra.mxu0 %v136
    %155 = vmatprep.subr.bf16.mxu0 0
    %156 = vmatpush1.bf16.msra.mxu0 %v137
    %157 = vmatprep.subr.bf16.mxu0 0
    %158 = vmatpush1.bf16.msra.mxu0 %v138
    %159 = vmatprep.subr.bf16.mxu0 0
    %160 = vmatpush1.bf16.msra.mxu0 %v139
    %161 = vmatprep.subr.bf16.mxu0 0
    %162 = vmatpush1.bf16.msra.mxu0 %v140
    %163 = vmatprep.subr.bf16.mxu0 0
    %164 = vmatpush1.bf16.msra.mxu0 %v141
    %165 = vmatprep.subr.bf16.mxu0 0
    %166 = vmatpush1.bf16.msra.mxu0 %v142
    %167 = vmatprep.subr.bf16.mxu0 0
    %168 = vmatpush1.bf16.msra.mxu0 0
    %169 = vmatprep.subr.bf16.mxu0 0
    %170 = vmatpush1.bf16.msra.mxu0 0
    %171 = vmatprep.subr.bf16.mxu0 0
    %172 = vmatpush1.bf16.msra.mxu0 0
    %173 = vmatprep.subr.bf16.mxu0 0
    %174 = vmatpush1.bf16.msra.mxu0 0
    %175 = vmatprep.subr.bf16.mxu0 0
    %176 = vmatpush1.bf16.msra.mxu0 0
    %177 = vmatprep.subr.bf16.mxu0 0
    %178 = vmatpush1.bf16.msra.mxu0 0
    %179 = vmatprep.subr.bf16.mxu0 0
    %180 = vmatpush1.bf16.msra.mxu0 0
    %181 = vmatprep.subr.bf16.mxu0 0
    %182 = vmatpush1.bf16.msra.mxu0 0
    %183 = vmatprep.mubr.bf16.mxu0 0
    %184 = vmatmul.mubr.bf16.gmra.mrb[0].mxu0 %v67
    %v185 = vpop.f32.mrb[0].mxu0
    %v186 = vadd.f32 %v101, %v185
    %v187 = vpop.f32.mrb[0].mxu0
    %v188 = vpop.f32.mrb[0].mxu0
    %v189 = vadd.f32 %v101, %v188
    %v190 = vpop.f32.mrb[0].mxu0
    %191 = vmatprep.mubr.bf16.mxu0 0
    %192 = vmatmul.mubr.bf16.gmra.mrb[0].mxu0 %v68
    %v193 = vpop.f32.mrb[0].mxu0
    %v194 = vadd.f32 %v101, %v193
    %v195 = vpop.f32.mrb[0].mxu0
    %v196 = vpop.f32.mrb[0].mxu0
    %v197 = vadd.f32 %v101, %v196
    %v198 = vpop.f32.mrb[0].mxu0
    %199 = vmatprep.mubr.bf16.mxu0 0
    %200 = vmatmul.mubr.bf16.gmra.mrb[0].mxu0 %v69
    %v201 = vpop.f32.mrb[0].mxu0
    %v202 = vadd.f32 %v101, %v201
    %v203 = vpop.f32.mrb[0].mxu0
    %v204 = vpop.f32.mrb[0].mxu0
    %v205 = vadd.f32 %v101, %v204
    %v206 = vpop.f32.mrb[0].mxu0
    %207 = vmatprep.mubr.bf16.mxu0 0
    %208 = vmatmul.mubr.bf16.gmra.mrb[0].mxu0 %v70
    %v209 = vpop.f32.mrb[0].mxu0
    %v210 = vadd.f32 %v101, %v209
    %v211 = vpop.f32.mrb[0].mxu0
    %v212 = vpop.f32.mrb[0].mxu0
    %v213 = vadd.f32 %v101, %v212
    %v214 = vpop.f32.mrb[0].mxu0
    %215 = vmatprep.mubr.bf16.mxu0 0
    %216 = vmatmul.mubr.bf16.gmra.mrb[0].mxu0 %v71
    %v217 = vpop.f32.mrb[0].mxu0
    %v218 = vadd.f32 %v101, %v217
    %v219 = vpop.f32.mrb[0].mxu0
    %v220 = vpop.f32.mrb[0].mxu0
    %v221 = vadd.f32 %v101, %v220
    %v222 = vpop.f32.mrb[0].mxu0
    %223 = vmatprep.mubr.bf16.mxu0 0
    %224 = vmatmul.mubr.bf16.gmra.mrb[0].mxu0 %v72
    %v225 = vpop.f32.mrb[0].mxu0
    %v226 = vadd.f32 %v101, %v225
    %v227 = vpop.f32.mrb[0].mxu0
    %v228 = vpop.f32.mrb[0].mxu0
    %v229 = vadd.f32 %v101, %v228
    %v230 = vpop.f32.mrb[0].mxu0
    %231 = vmatprep.mubr.bf16.mxu0 0
    %232 = vmatmul.mubr.bf16.gmra.mrb[0].mxu0 %v73
    %v233 = vpop.f32.mrb[0].mxu0
    %v234 = vadd.f32 %v101, %v233
    %v235 = vpop.f32.mrb[0].mxu0
    %v236 = vpop.f32.mrb[0].mxu0
    %v237 = vadd.f32 %v101, %v236
    %v238 = vpop.f32.mrb[0].mxu0
    %239 = vmatprep.mubr.bf16.mxu0 0
    %240 = vmatmul.mubr.bf16.gmra.mrb[0].mxu0 %v74
    %v241 = vpop.f32.mrb[0].mxu0
    %v242 = vadd.f32 %v101, %v241
    %v243 = vpop.f32.mrb[0].mxu0
    %v244 = vpop.f32.mrb[0].mxu0
    %v245 = vadd.f32 %v101, %v244
    %v246 = vpop.f32.mrb[0].mxu0
    %247 = vmatprep.mubr.bf16.mxu0 0
    %248 = vmatmul.mubr.bf16.gmra.mrb[0].mxu0 %v75
    %v249 = vpop.f32.mrb[0].mxu0
    %v250 = vadd.f32 %v101, %v249
    %v251 = vpop.f32.mrb[0].mxu0
    %v252 = vpop.f32.mrb[0].mxu0
    %v253 = vadd.f32 %v101, %v252
    %v254 = vpop.f32.mrb[0].mxu0
    %255 = vmatprep.mubr.bf16.mxu0 0
    %256 = vmatmul.mubr.bf16.gmra.mrb[0].mxu0 %v76
    %v257 = vpop.f32.mrb[0].mxu0
    %v258 = vadd.f32 %v101, %v257
    %v259 = vpop.f32.mrb[0].mxu0
    %v260 = vpop.f32.mrb[0].mxu0
    %v261 = vadd.f32 %v101, %v260
    %v262 = vpop.f32.mrb[0].mxu0
    %263 = vmatprep.mubr.bf16.mxu0 0
    %264 = vmatmul.mubr.bf16.gmra.mrb[0].mxu0 %v77
    %v265 = vpop.f32.mrb[0].mxu0
    %v266 = vadd.f32 %v101, %v265
    %v267 = vpop.f32.mrb[0].mxu0
    %v268 = vpop.f32.mrb[0].mxu0
    %v269 = vadd.f32 %v101, %v268
    %v270 = vpop.f32.mrb[0].mxu0
    %271 = vmatprep.mubr.bf16.mxu0 0
    %272 = vmatmul.mubr.bf16.gmra.mrb[0].mxu0 %v78
    %v273 = vpop.f32.mrb[0].mxu0
    %v274 = vadd.f32 %v101, %v273
    %v275 = vpop.f32.mrb[0].mxu0
    %v276 = vpop.f32.mrb[0].mxu0
    %v277 = vadd.f32 %v101, %v276
    %v278 = vpop.f32.mrb[0].mxu0
    %279 = vmatprep.mubr.bf16.mxu0 0
    %280 = vmatmul.mubr.bf16.gmra.mrb[0].mxu0 %v79
    %v281 = vpop.f32.mrb[0].mxu0
    %v282 = vadd.f32 %v101, %v281
    %v283 = vpop.f32.mrb[0].mxu0
    %v284 = vpop.f32.mrb[0].mxu0
    %v285 = vadd.f32 %v101, %v284
    %v286 = vpop.f32.mrb[0].mxu0
    %287 = vdwg.mxu0
    %v288 = vmax.f32 %v186, 0.0
    %v289 = vmax.f32 %v189, 0.0
    %v290 = vmax.f32 %v194, 0.0
    %v291 = vmax.f32 %v197, 0.0
    %v292 = vmax.f32 %v202, 0.0
    %v293 = vmax.f32 %v205, 0.0
    %v294 = vmax.f32 %v210, 0.0
    %v295 = vmax.f32 %v213, 0.0
    %v296 = vmax.f32 %v218, 0.0
    %v297 = vmax.f32 %v221, 0.0
    %v298 = vmax.f32 %v226, 0.0
    %v299 = vmax.f32 %v229, 0.0
    %v300 = vmax.f32 %v234, 0.0
    %v301 = vmax.f32 %v237, 0.0
    %v302 = vmax.f32 %v242, 0.0
    %v303 = vmax.f32 %v245, 0.0
    %v304 = vmax.f32 %v250, 0.0
    %v305 = vmax.f32 %v253, 0.0
    %v306 = vmax.f32 %v258, 0.0
    %v307 = vmax.f32 %v261, 0.0
    %v308 = vmax.f32 %v266, 0.0
    %v309 = vmax.f32 %v269, 0.0
    %v310 = vmax.f32 %v274, 0.0
    %v311 = vmax.f32 %v277, 0.0
    %v312 = vmax.f32 %v282, 0.0
    %v313 = vmax.f32 %v285, 0.0
    %v314 = vpack.c.bf16 %v289, %v288
    %v315 = vpack.c.bf16 %v291, %v290
    %v316 = vpack.c.bf16 %v293, %v292
    %v317 = vpack.c.bf16 %v295, %v294
    %v318 = vpack.c.bf16 %v297, %v296
    %v319 = vpack.c.bf16 %v299, %v298
    %v320 = vpack.c.bf16 %v301, %v300
    %v321 = vpack.c.bf16 %v303, %v302
    %v322 = vpack.c.bf16 %v305, %v304
    %v323 = vpack.c.bf16 %v307, %v306
    %v324 = vpack.c.bf16 %v309, %v308
    %v325 = vpack.c.bf16 %v311, %v310
    %v326 = vpack.c.bf16 %v313, %v312
    %v327 = vld [vmem:[%s3] sm:$0xf]
    %v328 = vld [vmem:[%s3 + $0x4] sm:$0xf]
    %v329 = vld [vmem:[%s3 + $0x8] sm:$0xf]
    %v330 = vld [vmem:[%s3 + $0xc] sm:$0xf]
    %v331 = vld [vmem:[%s3 + $0x10] sm:$0xf]
    %v332 = vld [vmem:[%s3 + $0x14] sm:$0xf]
    %v333 = vld [vmem:[%s3 + $0x18] sm:$0xf]
    %v334 = vld [vmem:[%s3 + $0x1c] sm:$0xf]
    %v335 = vld [vmem:[%s4] sm:$0x1]
    %v337 = vlaneseq
    %v338 = vshrl.u32 %v337, 7
    %v339 = vsub.s32 0, %v338
    %v340 = vrot.slane %v335, %v339
    %v350 = vunpack.c.l.b16 %v327
    %v351 = vunpack.c.l.b16 %v328
    %v352 = vunpack.c.l.b16 %v329
    %v353 = vunpack.c.l.b16 %v330
    %v354 = vunpack.c.l.b16 %v331
    %v355 = vunpack.c.l.b16 %v332
    %v356 = vunpack.c.l.b16 %v333
    %v357 = vunpack.c.l.b16 %v334
    %v358 = vpack.c.b16 %v351, %v350
    %v359 = vpack.c.b16 %v353, %v352
    %v360 = vpack.c.b16 %v355, %v354
    %v361 = vpack.c.b16 %v357, %v356
    %vm366 = vcmask 523264
    %v368 = vsel %vm366, %v314, 0
    %v371 = vsel %vm366, %v315, 0
    %v374 = vsel %vm366, %v316, 0
    %v377 = vsel %vm366, %v317, 0
    %v380 = vsel %vm366, %v318, 0
    %v383 = vsel %vm366, %v319, 0
    %v386 = vsel %vm366, %v320, 0
    %v389 = vsel %vm366, %v321, 0
    %v392 = vsel %vm366, %v322, 0
    %v395 = vsel %vm366, %v323, 0
    %v398 = vsel %vm366, %v324, 0
    %v401 = vsel %vm366, %v325, 0
    %v404 = vsel %vm366, %v326, 0
    %406 = vmatprep.subr.bf16.mxu0 0
    %407 = vmatpush1.bf16.msra.mxu0 %v358
    %408 = vmatprep.subr.bf16.mxu0 0
    %409 = vmatpush1.bf16.msra.mxu0 %v359
    %410 = vmatprep.subr.bf16.mxu0 0
    %411 = vmatpush1.bf16.msra.mxu0 %v360
    %412 = vmatprep.subr.bf16.mxu0 0
    %413 = vmatpush1.bf16.msra.mxu0 %v361
    %414 = vmatprep.subr.bf16.mxu0 0
    %415 = vmatpush1.bf16.msra.mxu0 0
    %416 = vmatprep.subr.bf16.mxu0 0
    %417 = vmatpush1.bf16.msra.mxu0 0
    %418 = vmatprep.subr.bf16.mxu0 0
    %419 = vmatpush1.bf16.msra.mxu0 0
    %420 = vmatprep.subr.bf16.mxu0 0
    %421 = vmatpush1.bf16.msra.mxu0 0
    %422 = vmatprep.subr.bf16.mxu0 0
    %423 = vmatpush1.bf16.msra.mxu0 0
    %424 = vmatprep.subr.bf16.mxu0 0
    %425 = vmatpush1.bf16.msra.mxu0 0
    %426 = vmatprep.subr.bf16.mxu0 0
    %427 = vmatpush1.bf16.msra.mxu0 0
    %428 = vmatprep.subr.bf16.mxu0 0
    %429 = vmatpush1.bf16.msra.mxu0 0
    %430 = vmatprep.subr.bf16.mxu0 0
    %431 = vmatpush1.bf16.msra.mxu0 0
    %432 = vmatprep.subr.bf16.mxu0 0
    %433 = vmatpush1.bf16.msra.mxu0 0
    %434 = vmatprep.subr.bf16.mxu0 0
    %435 = vmatpush1.bf16.msra.mxu0 0
    %436 = vmatprep.subr.bf16.mxu0 0
    %437 = vmatpush1.bf16.msra.mxu0 0
    %438 = vmatprep.mubr.bf16.mxu0 0
    %439 = vmatmul.mubr.bf16.gmra.mrb[0].mxu0 %v368
    %v440 = vpop.f32.mrb[0].mxu0
    %v441 = vadd.f32 %v340, %v440
    %v442 = vpop.f32.mrb[0].mxu0
    %v443 = vpop.f32.mrb[0].mxu0
    %v444 = vadd.f32 %v340, %v443
    %v445 = vpop.f32.mrb[0].mxu0
    %446 = vmatprep.mubr.bf16.mxu0 0
    %447 = vmatmul.mubr.bf16.gmra.mrb[0].mxu0 %v371
    %v448 = vpop.f32.mrb[0].mxu0
    %v449 = vadd.f32 %v340, %v448
    %v450 = vpop.f32.mrb[0].mxu0
    %v451 = vpop.f32.mrb[0].mxu0
    %v452 = vadd.f32 %v340, %v451
    %v453 = vpop.f32.mrb[0].mxu0
    %454 = vmatprep.mubr.bf16.mxu0 0
    %455 = vmatmul.mubr.bf16.gmra.mrb[0].mxu0 %v374
    %v456 = vpop.f32.mrb[0].mxu0
    %v457 = vadd.f32 %v340, %v456
    %v458 = vpop.f32.mrb[0].mxu0
    %v459 = vpop.f32.mrb[0].mxu0
    %v460 = vadd.f32 %v340, %v459
    %v461 = vpop.f32.mrb[0].mxu0
    %462 = vmatprep.mubr.bf16.mxu0 0
    %463 = vmatmul.mubr.bf16.gmra.mrb[0].mxu0 %v377
    %v464 = vpop.f32.mrb[0].mxu0
    %v465 = vadd.f32 %v340, %v464
    %v466 = vpop.f32.mrb[0].mxu0
    %v467 = vpop.f32.mrb[0].mxu0
    %v468 = vadd.f32 %v340, %v467
    %v469 = vpop.f32.mrb[0].mxu0
    %470 = vmatprep.mubr.bf16.mxu0 0
    %471 = vmatmul.mubr.bf16.gmra.mrb[0].mxu0 %v380
    %v472 = vpop.f32.mrb[0].mxu0
    %v473 = vadd.f32 %v340, %v472
    %v474 = vpop.f32.mrb[0].mxu0
    %v475 = vpop.f32.mrb[0].mxu0
    %v476 = vadd.f32 %v340, %v475
    %v477 = vpop.f32.mrb[0].mxu0
    %478 = vmatprep.mubr.bf16.mxu0 0
    %479 = vmatmul.mubr.bf16.gmra.mrb[0].mxu0 %v383
    %v480 = vpop.f32.mrb[0].mxu0
    %v481 = vadd.f32 %v340, %v480
    %v482 = vpop.f32.mrb[0].mxu0
    %v483 = vpop.f32.mrb[0].mxu0
    %v484 = vadd.f32 %v340, %v483
    %v485 = vpop.f32.mrb[0].mxu0
    %486 = vmatprep.mubr.bf16.mxu0 0
    %487 = vmatmul.mubr.bf16.gmra.mrb[0].mxu0 %v386
    %v488 = vpop.f32.mrb[0].mxu0
    %v489 = vadd.f32 %v340, %v488
    %v490 = vpop.f32.mrb[0].mxu0
    %v491 = vpop.f32.mrb[0].mxu0
    %v492 = vadd.f32 %v340, %v491
    %v493 = vpop.f32.mrb[0].mxu0
    %494 = vmatprep.mubr.bf16.mxu0 0
    %495 = vmatmul.mubr.bf16.gmra.mrb[0].mxu0 %v389
    %v496 = vpop.f32.mrb[0].mxu0
    %v497 = vadd.f32 %v340, %v496
    %v498 = vpop.f32.mrb[0].mxu0
    %v499 = vpop.f32.mrb[0].mxu0
    %v500 = vadd.f32 %v340, %v499
    %v501 = vpop.f32.mrb[0].mxu0
    %502 = vmatprep.mubr.bf16.mxu0 0
    %503 = vmatmul.mubr.bf16.gmra.mrb[0].mxu0 %v392
    %v504 = vpop.f32.mrb[0].mxu0
    %v505 = vadd.f32 %v340, %v504
    %v506 = vpop.f32.mrb[0].mxu0
    %v507 = vpop.f32.mrb[0].mxu0
    %v508 = vadd.f32 %v340, %v507
    %v509 = vpop.f32.mrb[0].mxu0
    %510 = vmatprep.mubr.bf16.mxu0 0
    %511 = vmatmul.mubr.bf16.gmra.mrb[0].mxu0 %v395
    %v512 = vpop.f32.mrb[0].mxu0
    %v513 = vadd.f32 %v340, %v512
    %v514 = vpop.f32.mrb[0].mxu0
    %v515 = vpop.f32.mrb[0].mxu0
    %v516 = vadd.f32 %v340, %v515
    %v517 = vpop.f32.mrb[0].mxu0
    %518 = vmatprep.mubr.bf16.mxu0 0
    %519 = vmatmul.mubr.bf16.gmra.mrb[0].mxu0 %v398
    %v520 = vpop.f32.mrb[0].mxu0
    %v521 = vadd.f32 %v340, %v520
    %v522 = vpop.f32.mrb[0].mxu0
    %v523 = vpop.f32.mrb[0].mxu0
    %v524 = vadd.f32 %v340, %v523
    %v525 = vpop.f32.mrb[0].mxu0
    %526 = vmatprep.mubr.bf16.mxu0 0
    %527 = vmatmul.mubr.bf16.gmra.mrb[0].mxu0 %v401
    %v528 = vpop.f32.mrb[0].mxu0
    %v529 = vadd.f32 %v340, %v528
    %v530 = vpop.f32.mrb[0].mxu0
    %v531 = vpop.f32.mrb[0].mxu0
    %v532 = vadd.f32 %v340, %v531
    %v533 = vpop.f32.mrb[0].mxu0
    %534 = vmatprep.mubr.bf16.mxu0 0
    %535 = vmatmul.mubr.bf16.gmra.mrb[0].mxu0 %v404
    %v536 = vpop.f32.mrb[0].mxu0
    %v537 = vadd.f32 %v340, %v536
    %v538 = vpop.f32.mrb[0].mxu0
    %v539 = vpop.f32.mrb[0].mxu0
    %v540 = vadd.f32 %v340, %v539
    %v541 = vpop.f32.mrb[0].mxu0
    %542 = vdwg.mxu0
    %v543 = vmax.f32 %v441, 0.0
    %v544 = vmax.f32 %v444, 0.0
    %v545 = vmax.f32 %v449, 0.0
    %v546 = vmax.f32 %v452, 0.0
    %v547 = vmax.f32 %v457, 0.0
    %v548 = vmax.f32 %v460, 0.0
    %v549 = vmax.f32 %v465, 0.0
    %v550 = vmax.f32 %v468, 0.0
    %v551 = vmax.f32 %v473, 0.0
    %v552 = vmax.f32 %v476, 0.0
    %v553 = vmax.f32 %v481, 0.0
    %v554 = vmax.f32 %v484, 0.0
    %v555 = vmax.f32 %v489, 0.0
    %v556 = vmax.f32 %v492, 0.0
    %v557 = vmax.f32 %v497, 0.0
    %v558 = vmax.f32 %v500, 0.0
    %v559 = vmax.f32 %v505, 0.0
    %v560 = vmax.f32 %v508, 0.0
    %v561 = vmax.f32 %v513, 0.0
    %v562 = vmax.f32 %v516, 0.0
    %v563 = vmax.f32 %v521, 0.0
    %v564 = vmax.f32 %v524, 0.0
    %v565 = vmax.f32 %v529, 0.0
    %v566 = vmax.f32 %v532, 0.0
    %v567 = vmax.f32 %v537, 0.0
    %v568 = vmax.f32 %v540, 0.0
    %v569 = vpack.c.bf16 %v544, %v543
    %v570 = vpack.c.bf16 %v546, %v545
    %v571 = vpack.c.bf16 %v548, %v547
    %v572 = vpack.c.bf16 %v550, %v549
    %v573 = vpack.c.bf16 %v552, %v551
    %v574 = vpack.c.bf16 %v554, %v553
    %v575 = vpack.c.bf16 %v556, %v555
    %v576 = vpack.c.bf16 %v558, %v557
    %v577 = vpack.c.bf16 %v560, %v559
    %v578 = vpack.c.bf16 %v562, %v561
    %v579 = vpack.c.bf16 %v564, %v563
    %v580 = vpack.c.bf16 %v566, %v565
    %v581 = vpack.c.bf16 %v568, %v567
    %v582 = vld [vmem:[%s5] sm:$0xf]
    %v583 = vld [vmem:[%s5 + $0x4] sm:$0xf]
    %v584 = vld [vmem:[%s5 + $0x8] sm:$0xf]
    %v585 = vld [vmem:[%s5 + $0xc] sm:$0xf]
    %v586 = vld [vmem:[%s6] sm:$0x1]
    %v588 = vlaneseq
    %v589 = vshrl.u32 %v588, 7
    %v590 = vsub.s32 0, %v589
    %v591 = vrot.slane %v586, %v590
    %v597 = vunpack.c.l.b16 %v582
    %v598 = vunpack.c.l.b16 %v583
    %v599 = vunpack.c.l.b16 %v584
    %v600 = vunpack.c.l.b16 %v585
    %v601 = vpack.c.b16 %v598, %v597
    %v602 = vpack.c.b16 %v600, %v599
    %vm605 = vcmask 261120
    %v607 = vsel %vm605, %v569, 0
    %v610 = vsel %vm605, %v570, 0
    %v613 = vsel %vm605, %v571, 0
    %v616 = vsel %vm605, %v572, 0
    %v619 = vsel %vm605, %v573, 0
    %v622 = vsel %vm605, %v574, 0
    %v625 = vsel %vm605, %v575, 0
    %v628 = vsel %vm605, %v576, 0
    %v631 = vsel %vm605, %v577, 0
    %v634 = vsel %vm605, %v578, 0
    %v637 = vsel %vm605, %v579, 0
    %v640 = vsel %vm605, %v580, 0
    %v643 = vsel %vm605, %v581, 0
    %645 = vmatprep.subr.bf16.mxu0 0
    %646 = vmatpush1.bf16.msra.mxu0 %v601
    %647 = vmatprep.subr.bf16.mxu0 0
    %648 = vmatpush1.bf16.msra.mxu0 %v602
    %649 = vmatprep.subr.bf16.mxu0 0
    %650 = vmatpush1.bf16.msra.mxu0 0
    %651 = vmatprep.subr.bf16.mxu0 0
    %652 = vmatpush1.bf16.msra.mxu0 0
    %653 = vmatprep.subr.bf16.mxu0 0
    %654 = vmatpush1.bf16.msra.mxu0 0
    %655 = vmatprep.subr.bf16.mxu0 0
    %656 = vmatpush1.bf16.msra.mxu0 0
    %657 = vmatprep.subr.bf16.mxu0 0
    %658 = vmatpush1.bf16.msra.mxu0 0
    %659 = vmatprep.subr.bf16.mxu0 0
    %660 = vmatpush1.bf16.msra.mxu0 0
    %661 = vmatprep.subr.bf16.mxu0 0
    %662 = vmatpush1.bf16.msra.mxu0 0
    %663 = vmatprep.subr.bf16.mxu0 0
    %664 = vmatpush1.bf16.msra.mxu0 0
    %665 = vmatprep.subr.bf16.mxu0 0
    %666 = vmatpush1.bf16.msra.mxu0 0
    %667 = vmatprep.subr.bf16.mxu0 0
    %668 = vmatpush1.bf16.msra.mxu0 0
    %669 = vmatprep.subr.bf16.mxu0 0
    %670 = vmatpush1.bf16.msra.mxu0 0
    %671 = vmatprep.subr.bf16.mxu0 0
    %672 = vmatpush1.bf16.msra.mxu0 0
    %673 = vmatprep.subr.bf16.mxu0 0
    %674 = vmatpush1.bf16.msra.mxu0 0
    %675 = vmatprep.subr.bf16.mxu0 0
    %676 = vmatpush1.bf16.msra.mxu0 0
    %677 = vmatprep.mubr.bf16.mxu0 0
    %678 = vmatmul.mubr.bf16.gmra.mrb[0].mxu0 %v607
    %v679 = vpop.f32.mrb[0].mxu0
    %v680 = vadd.f32 %v591, %v679
    %v681 = vpop.f32.mrb[0].mxu0
    %v682 = vpop.f32.mrb[0].mxu0
    %v683 = vadd.f32 %v591, %v682
    %v684 = vpop.f32.mrb[0].mxu0
    %685 = vmatprep.mubr.bf16.mxu0 0
    %686 = vmatmul.mubr.bf16.gmra.mrb[0].mxu0 %v610
    %v687 = vpop.f32.mrb[0].mxu0
    %v688 = vadd.f32 %v591, %v687
    %v689 = vpop.f32.mrb[0].mxu0
    %v690 = vpop.f32.mrb[0].mxu0
    %v691 = vadd.f32 %v591, %v690
    %v692 = vpop.f32.mrb[0].mxu0
    %693 = vmatprep.mubr.bf16.mxu0 0
    %694 = vmatmul.mubr.bf16.gmra.mrb[0].mxu0 %v613
    %v695 = vpop.f32.mrb[0].mxu0
    %v696 = vadd.f32 %v591, %v695
    %v697 = vpop.f32.mrb[0].mxu0
    %v698 = vpop.f32.mrb[0].mxu0
    %v699 = vadd.f32 %v591, %v698
    %v700 = vpop.f32.mrb[0].mxu0
    %701 = vmatprep.mubr.bf16.mxu0 0
    %702 = vmatmul.mubr.bf16.gmra.mrb[0].mxu0 %v616
    %v703 = vpop.f32.mrb[0].mxu0
    %v704 = vadd.f32 %v591, %v703
    %v705 = vpop.f32.mrb[0].mxu0
    %v706 = vpop.f32.mrb[0].mxu0
    %v707 = vadd.f32 %v591, %v706
    %v708 = vpop.f32.mrb[0].mxu0
    %709 = vmatprep.mubr.bf16.mxu0 0
    %710 = vmatmul.mubr.bf16.gmra.mrb[0].mxu0 %v619
    %v711 = vpop.f32.mrb[0].mxu0
    %v712 = vadd.f32 %v591, %v711
    %v713 = vpop.f32.mrb[0].mxu0
    %v714 = vpop.f32.mrb[0].mxu0
    %v715 = vadd.f32 %v591, %v714
    %v716 = vpop.f32.mrb[0].mxu0
    %717 = vmatprep.mubr.bf16.mxu0 0
    %718 = vmatmul.mubr.bf16.gmra.mrb[0].mxu0 %v622
    %v719 = vpop.f32.mrb[0].mxu0
    %v720 = vadd.f32 %v591, %v719
    %v721 = vpop.f32.mrb[0].mxu0
    %v722 = vpop.f32.mrb[0].mxu0
    %v723 = vadd.f32 %v591, %v722
    %v724 = vpop.f32.mrb[0].mxu0
    %725 = vmatprep.mubr.bf16.mxu0 0
    %726 = vmatmul.mubr.bf16.gmra.mrb[0].mxu0 %v625
    %v727 = vpop.f32.mrb[0].mxu0
    %v728 = vadd.f32 %v591, %v727
    %v729 = vpop.f32.mrb[0].mxu0
    %v730 = vpop.f32.mrb[0].mxu0
    %v731 = vadd.f32 %v591, %v730
    %v732 = vpop.f32.mrb[0].mxu0
    %733 = vmatprep.mubr.bf16.mxu0 0
    %734 = vmatmul.mubr.bf16.gmra.mrb[0].mxu0 %v628
    %v735 = vpop.f32.mrb[0].mxu0
    %v736 = vadd.f32 %v591, %v735
    %v737 = vpop.f32.mrb[0].mxu0
    %v738 = vpop.f32.mrb[0].mxu0
    %v739 = vadd.f32 %v591, %v738
    %v740 = vpop.f32.mrb[0].mxu0
    %741 = vmatprep.mubr.bf16.mxu0 0
    %742 = vmatmul.mubr.bf16.gmra.mrb[0].mxu0 %v631
    %v743 = vpop.f32.mrb[0].mxu0
    %v744 = vadd.f32 %v591, %v743
    %v745 = vpop.f32.mrb[0].mxu0
    %v746 = vpop.f32.mrb[0].mxu0
    %v747 = vadd.f32 %v591, %v746
    %v748 = vpop.f32.mrb[0].mxu0
    %749 = vmatprep.mubr.bf16.mxu0 0
    %750 = vmatmul.mubr.bf16.gmra.mrb[0].mxu0 %v634
    %v751 = vpop.f32.mrb[0].mxu0
    %v752 = vadd.f32 %v591, %v751
    %v753 = vpop.f32.mrb[0].mxu0
    %v754 = vpop.f32.mrb[0].mxu0
    %v755 = vadd.f32 %v591, %v754
    %v756 = vpop.f32.mrb[0].mxu0
    %757 = vmatprep.mubr.bf16.mxu0 0
    %758 = vmatmul.mubr.bf16.gmra.mrb[0].mxu0 %v637
    %v759 = vpop.f32.mrb[0].mxu0
    %v760 = vadd.f32 %v591, %v759
    %v761 = vpop.f32.mrb[0].mxu0
    %v762 = vpop.f32.mrb[0].mxu0
    %v763 = vadd.f32 %v591, %v762
    %v764 = vpop.f32.mrb[0].mxu0
    %765 = vmatprep.mubr.bf16.mxu0 0
    %766 = vmatmul.mubr.bf16.gmra.mrb[0].mxu0 %v640
    %v767 = vpop.f32.mrb[0].mxu0
    %v768 = vadd.f32 %v591, %v767
    %v769 = vpop.f32.mrb[0].mxu0
    %v770 = vpop.f32.mrb[0].mxu0
    %v771 = vadd.f32 %v591, %v770
    %v772 = vpop.f32.mrb[0].mxu0
    %773 = vmatprep.mubr.bf16.mxu0 0
    %774 = vmatmul.mubr.bf16.gmra.mrb[0].mxu0 %v643
    %v775 = vpop.f32.mrb[0].mxu0
    %v776 = vadd.f32 %v591, %v775
    %v777 = vpop.f32.mrb[0].mxu0
    %v778 = vpop.f32.mrb[0].mxu0
    %v779 = vadd.f32 %v591, %v778
    %v780 = vpop.f32.mrb[0].mxu0
    %781 = vdwg.mxu0
    %v782 = vmax.f32 %v680, 0.0
    %v783 = vmax.f32 %v683, 0.0
    %v784 = vmax.f32 %v688, 0.0
    %v785 = vmax.f32 %v691, 0.0
    %v786 = vmax.f32 %v696, 0.0
    %v787 = vmax.f32 %v699, 0.0
    %v788 = vmax.f32 %v704, 0.0
    %v789 = vmax.f32 %v707, 0.0
    %v790 = vmax.f32 %v712, 0.0
    %v791 = vmax.f32 %v715, 0.0
    %v792 = vmax.f32 %v720, 0.0
    %v793 = vmax.f32 %v723, 0.0
    %v794 = vmax.f32 %v728, 0.0
    %v795 = vmax.f32 %v731, 0.0
    %v796 = vmax.f32 %v736, 0.0
    %v797 = vmax.f32 %v739, 0.0
    %v798 = vmax.f32 %v744, 0.0
    %v799 = vmax.f32 %v747, 0.0
    %v800 = vmax.f32 %v752, 0.0
    %v801 = vmax.f32 %v755, 0.0
    %v802 = vmax.f32 %v760, 0.0
    %v803 = vmax.f32 %v763, 0.0
    %v804 = vmax.f32 %v768, 0.0
    %v805 = vmax.f32 %v771, 0.0
    %v806 = vmax.f32 %v776, 0.0
    %v807 = vmax.f32 %v779, 0.0
    %v808 = vpack.c.bf16 %v783, %v782
    %v809 = vpack.c.bf16 %v785, %v784
    %v810 = vpack.c.bf16 %v787, %v786
    %v811 = vpack.c.bf16 %v789, %v788
    %v812 = vpack.c.bf16 %v791, %v790
    %v813 = vpack.c.bf16 %v793, %v792
    %v814 = vpack.c.bf16 %v795, %v794
    %v815 = vpack.c.bf16 %v797, %v796
    %v816 = vpack.c.bf16 %v799, %v798
    %v817 = vpack.c.bf16 %v801, %v800
    %v818 = vpack.c.bf16 %v803, %v802
    %v819 = vpack.c.bf16 %v805, %v804
    %v820 = vpack.c.bf16 %v807, %v806
    %v834 = vunpack.c.l.b16 %v808
    %v835 = vunpack.c.h.b16 %v808
    %v836 = vunpack.c.l.b16 %v809
    %v837 = vunpack.c.h.b16 %v809
    %v838 = vunpack.c.l.b16 %v810
    %v839 = vunpack.c.h.b16 %v810
    %v840 = vunpack.c.l.b16 %v811
    %v841 = vunpack.c.h.b16 %v811
    %v842 = vunpack.c.l.b16 %v812
    %v843 = vunpack.c.h.b16 %v812
    %v844 = vunpack.c.l.b16 %v813
    %v845 = vunpack.c.h.b16 %v813
    %v846 = vunpack.c.l.b16 %v814
    %v847 = vunpack.c.h.b16 %v814
    %v848 = vunpack.c.l.b16 %v815
    %v849 = vunpack.c.h.b16 %v815
    %v850 = vunpack.c.l.b16 %v816
    %v851 = vunpack.c.h.b16 %v816
    %v852 = vunpack.c.l.b16 %v817
    %v853 = vunpack.c.h.b16 %v817
    %v854 = vunpack.c.l.b16 %v818
    %v855 = vunpack.c.h.b16 %v818
    %v856 = vunpack.c.l.b16 %v819
    %v857 = vunpack.c.h.b16 %v819
    %v858 = vunpack.c.l.b16 %v820
    %v859 = vunpack.c.h.b16 %v820
    %v860 = vpack.c.b16 %v834, %v834
    %v861 = vpack.c.b16 %v835, %v835
    %v862 = vpack.c.b16 %v836, %v836
    %v863 = vpack.c.b16 %v837, %v837
    %v864 = vpack.c.b16 %v838, %v838
    %v865 = vpack.c.b16 %v839, %v839
    %v866 = vpack.c.b16 %v840, %v840
    %v867 = vpack.c.b16 %v841, %v841
    %v868 = vpack.c.b16 %v842, %v842
    %v869 = vpack.c.b16 %v843, %v843
    %v870 = vpack.c.b16 %v844, %v844
    %v871 = vpack.c.b16 %v845, %v845
    %v872 = vpack.c.b16 %v846, %v846
    %v873 = vpack.c.b16 %v847, %v847
    %v874 = vpack.c.b16 %v848, %v848
    %v875 = vpack.c.b16 %v849, %v849
    %v876 = vpack.c.b16 %v850, %v850
    %v877 = vpack.c.b16 %v851, %v851
    %v878 = vpack.c.b16 %v852, %v852
    %v879 = vpack.c.b16 %v853, %v853
    %v880 = vpack.c.b16 %v854, %v854
    %v881 = vpack.c.b16 %v855, %v855
    %v882 = vpack.c.b16 %v856, %v856
    %v883 = vpack.c.b16 %v857, %v857
    %v884 = vpack.c.b16 %v858, %v858
    %v885 = vpack.c.b16 %v859, %v859
    %vm912 = vcmask 125952
    %913 = vst.msk [vmem:[#allocation4] sm:$0xf] %vm912, %v860
    %914 = vst.msk [vmem:[#allocation4 + $0x4] sm:$0xf] %vm912, %v861
    %915 = vst.msk [vmem:[#allocation4 + $0x8] sm:$0xf] %vm912, %v862
    %916 = vst.msk [vmem:[#allocation4 + $0xc] sm:$0xf] %vm912, %v863
    %917 = vst.msk [vmem:[#allocation4 + $0x10] sm:$0xf] %vm912, %v864
    %918 = vst.msk [vmem:[#allocation4 + $0x14] sm:$0xf] %vm912, %v865
    %919 = vst.msk [vmem:[#allocation4 + $0x18] sm:$0xf] %vm912, %v866
    %920 = vst.msk [vmem:[#allocation4 + $0x1c] sm:$0xf] %vm912, %v867
    %921 = vst.msk [vmem:[#allocation4 + $0x20] sm:$0xf] %vm912, %v868
    %922 = vst.msk [vmem:[#allocation4 + $0x24] sm:$0xf] %vm912, %v869
    %923 = vst.msk [vmem:[#allocation4 + $0x28] sm:$0xf] %vm912, %v870
    %924 = vst.msk [vmem:[#allocation4 + $0x2c] sm:$0xf] %vm912, %v871
    %925 = vst.msk [vmem:[#allocation4 + $0x30] sm:$0xf] %vm912, %v872
    %926 = vst.msk [vmem:[#allocation4 + $0x34] sm:$0xf] %vm912, %v873
    %927 = vst.msk [vmem:[#allocation4 + $0x38] sm:$0xf] %vm912, %v874
    %928 = vst.msk [vmem:[#allocation4 + $0x3c] sm:$0xf] %vm912, %v875
    %929 = vst.msk [vmem:[#allocation4 + $0x40] sm:$0xf] %vm912, %v876
    %930 = vst.msk [vmem:[#allocation4 + $0x44] sm:$0xf] %vm912, %v877
    %931 = vst.msk [vmem:[#allocation4 + $0x48] sm:$0xf] %vm912, %v878
    %932 = vst.msk [vmem:[#allocation4 + $0x4c] sm:$0xf] %vm912, %v879
    %933 = vst.msk [vmem:[#allocation4 + $0x50] sm:$0xf] %vm912, %v880
    %934 = vst.msk [vmem:[#allocation4 + $0x54] sm:$0xf] %vm912, %v881
    %935 = vst.msk [vmem:[#allocation4 + $0x58] sm:$0xf] %vm912, %v882
    %936 = vst.msk [vmem:[#allocation4 + $0x5c] sm:$0xf] %vm912, %v883
    %937 = vst.msk [vmem:[#allocation4 + $0x60] sm:$0xf] %vm912, %v884
    %938 = vst.msk [vmem:[#allocation4 + $0x64] sm:$0xf] %vm912, %v885
    // Predicated region
    $region34: #{encoder_forward.1} parent=1 // pred_check
      _
    $region35: #{encoder_forward.1} parent=1 // pred_check_branch
      %940 = sbr.rel (0) target = $region37
    $region36: #{encoder_forward.1} parent=1 // pred_region
      // Predicated region
      $region38: #{encoder_forward.1} parent=36 // pred_check
        _
      $region39: #{encoder_forward.1} parent=36 // pred_check_branch
        %942 = sbr.rel (0) target = $region41
      $region40: #{encoder_forward.1} parent=36 // pred_region
        // Predicated region
        $region42: #{encoder_forward.1} parent=40 // pred_check
          _
        $region43: #{encoder_forward.1} parent=40 // pred_check_branch
          %944 = sbr.rel target = $region45
        $region44: #{encoder_forward.1} parent=40 // pred_region
          // Predicated region
          $region57: #{encoder_forward.1} parent=44 // pred_check
            _
          $region58: #{encoder_forward.1} parent=44 // pred_check_branch
            %1007 = sbr.rel (0) target = $region60
          $region59: #{encoder_forward.1} parent=44 // pred_region
            loop: start=0, step=1, limit=1
            $region61: #{encoder_forward.1} parent=59 // loop_pre_header
              _
            $region62: #{encoder_forward.1} parent=59 // loop_header
              %s1009 = sphi 0, %s1013
              %p1010 = scmp.ge.s32.totalorder %s1009, 1
              %s1014 = sphi [#allocation4], [#allocation4]
              %s1015 = sphi %s7, %s7
            $region63: #{encoder_forward.1} parent=59 // loop_header_branch
              %1012 = sbr.rel (%p1010) target = $region67
            $region64: #{encoder_forward.1} parent=59 // loop_body
              _
            $region65: #{encoder_forward.1} parent=59 // loop_footer
              %s1013 = sadd.s32 1, %s1009
            $region66: #{encoder_forward.1} parent=59 // loop_footer_branch
              %1008 = sbr.rel target = $region62
            $region67: #{encoder_forward.1} parent=59 // loop_exit
              _
            loop: start=0, step=1, limit=1
            $region68: #{encoder_forward.1} parent=59 // loop_pre_header
              _
            $region69: #{encoder_forward.1} parent=59 // loop_header
              %s1018 = sphi 0, %s1022
              %p1019 = scmp.ge.s32.totalorder %s1018, 1
              %s1023 = sphi [#allocation4], [#allocation4]
              %s1024 = sphi %s7, %s7
            $region70: #{encoder_forward.1} parent=59 // loop_header_branch
              %1021 = sbr.rel (%p1019) target = $region74
            $region71: #{encoder_forward.1} parent=59 // loop_body
              %v1025 = vld [vmem:[%s1023] sm:$0xf]
              %1026 = vst [vmem:[%s1024] sm:$0xf] %v1025
              %v1027 = vld [vmem:[%s1023 + $0x4] sm:$0xf]
              %1028 = vst [vmem:[%s1024 + $0x4] sm:$0xf] %v1027
              %v1029 = vld [vmem:[%s1023 + $0x8] sm:$0xf]
              %1030 = vst [vmem:[%s1024 + $0x8] sm:$0xf] %v1029
              %v1031 = vld [vmem:[%s1023 + $0xc] sm:$0xf]
              %1032 = vst [vmem:[%s1024 + $0xc] sm:$0xf] %v1031
              %v1033 = vld [vmem:[%s1023 + $0x10] sm:$0xf]
              %1034 = vst [vmem:[%s1024 + $0x10] sm:$0xf] %v1033
              %v1035 = vld [vmem:[%s1023 + $0x14] sm:$0xf]
              %1036 = vst [vmem:[%s1024 + $0x14] sm:$0xf] %v1035
              %v1037 = vld [vmem:[%s1023 + $0x18] sm:$0xf]
              %1038 = vst [vmem:[%s1024 + $0x18] sm:$0xf] %v1037
              %v1039 = vld [vmem:[%s1023 + $0x1c] sm:$0xf]
              %1040 = vst [vmem:[%s1024 + $0x1c] sm:$0xf] %v1039
              %v1041 = vld [vmem:[%s1023 + $0x20] sm:$0xf]
              %1042 = vst [vmem:[%s1024 + $0x20] sm:$0xf] %v1041
              %v1043 = vld [vmem:[%s1023 + $0x24] sm:$0xf]
              %1044 = vst [vmem:[%s1024 + $0x24] sm:$0xf] %v1043
              %v1045 = vld [vmem:[%s1023 + $0x28] sm:$0xf]
              %1046 = vst [vmem:[%s1024 + $0x28] sm:$0xf] %v1045
              %v1047 = vld [vmem:[%s1023 + $0x2c] sm:$0xf]
              %1048 = vst [vmem:[%s1024 + $0x2c] sm:$0xf] %v1047
              %v1049 = vld [vmem:[%s1023 + $0x30] sm:$0xf]
              %1050 = vst [vmem:[%s1024 + $0x30] sm:$0xf] %v1049
              %v1051 = vld [vmem:[%s1023 + $0x34] sm:$0xf]
              %1052 = vst [vmem:[%s1024 + $0x34] sm:$0xf] %v1051
              %v1053 = vld [vmem:[%s1023 + $0x38] sm:$0xf]
              %1054 = vst [vmem:[%s1024 + $0x38] sm:$0xf] %v1053
              %v1055 = vld [vmem:[%s1023 + $0x3c] sm:$0xf]
              %1056 = vst [vmem:[%s1024 + $0x3c] sm:$0xf] %v1055
              %v1057 = vld [vmem:[%s1023 + $0x40] sm:$0xf]
              %1058 = vst [vmem:[%s1024 + $0x40] sm:$0xf] %v1057
              %v1059 = vld [vmem:[%s1023 + $0x44] sm:$0xf]
              %1060 = vst [vmem:[%s1024 + $0x44] sm:$0xf] %v1059
              %v1061 = vld [vmem:[%s1023 + $0x48] sm:$0xf]
              %1062 = vst [vmem:[%s1024 + $0x48] sm:$0xf] %v1061
              %v1063 = vld [vmem:[%s1023 + $0x4c] sm:$0xf]
              %1064 = vst [vmem:[%s1024 + $0x4c] sm:$0xf] %v1063
              %v1065 = vld [vmem:[%s1023 + $0x50] sm:$0xf]
              %1066 = vst [vmem:[%s1024 + $0x50] sm:$0xf] %v1065
              %v1067 = vld [vmem:[%s1023 + $0x54] sm:$0xf]
              %1068 = vst [vmem:[%s1024 + $0x54] sm:$0xf] %v1067
              %v1069 = vld [vmem:[%s1023 + $0x58] sm:$0xf]
              %1070 = vst [vmem:[%s1024 + $0x58] sm:$0xf] %v1069
              %v1071 = vld [vmem:[%s1023 + $0x5c] sm:$0xf]
              %1072 = vst [vmem:[%s1024 + $0x5c] sm:$0xf] %v1071
              %v1073 = vld [vmem:[%s1023 + $0x60] sm:$0xf]
              %1074 = vst [vmem:[%s1024 + $0x60] sm:$0xf] %v1073
            $region72: #{encoder_forward.1} parent=59 // loop_footer
              %s1022 = sadd.s32 1, %s1018
            $region73: #{encoder_forward.1} parent=59 // loop_footer_branch
              %1017 = sbr.rel target = $region69
            $region74: #{encoder_forward.1} parent=59 // loop_exit
              _
          $region60: #{encoder_forward.1} parent=44 // pred_fallthru
            _
        $region45: #{encoder_forward.1} parent=40 // pred_fallthru
          _
        // Predicated region
        $region46: #{encoder_forward.1} parent=40 // pred_check
          _
        $region47: #{encoder_forward.1} parent=40 // pred_check_branch
          %946 = sbr.rel (0) target = $region49
        $region48: #{encoder_forward.1} parent=40 // pred_region
          loop: start=0, step=1, limit=1
          $region50: #{encoder_forward.1} parent=48 // loop_pre_header
            _
          $region51: #{encoder_forward.1} parent=48 // loop_header
            %s949 = sphi 0, %s953
            %p950 = scmp.ge.s32.totalorder %s949, 1
            %s954 = sphi [#allocation4], [#allocation4]
            %s955 = sphi %s7, %s7
          $region52: #{encoder_forward.1} parent=48 // loop_header_branch
            %952 = sbr.rel (%p950) target = $region56
          $region53: #{encoder_forward.1} parent=48 // loop_body
            %v956 = vld [vmem:[%s954] sm:$0xf]
            %957 = vst [vmem:[%s955] sm:$0xf] %v956
            %v958 = vld [vmem:[%s954 + $0x4] sm:$0xf]
            %959 = vst [vmem:[%s955 + $0x4] sm:$0xf] %v958
            %v960 = vld [vmem:[%s954 + $0x8] sm:$0xf]
            %961 = vst [vmem:[%s955 + $0x8] sm:$0xf] %v960
            %v962 = vld [vmem:[%s954 + $0xc] sm:$0xf]
            %963 = vst [vmem:[%s955 + $0xc] sm:$0xf] %v962
            %v964 = vld [vmem:[%s954 + $0x10] sm:$0xf]
            %965 = vst [vmem:[%s955 + $0x10] sm:$0xf] %v964
            %v966 = vld [vmem:[%s954 + $0x14] sm:$0xf]
            %967 = vst [vmem:[%s955 + $0x14] sm:$0xf] %v966
            %v968 = vld [vmem:[%s954 + $0x18] sm:$0xf]
            %969 = vst [vmem:[%s955 + $0x18] sm:$0xf] %v968
            %v970 = vld [vmem:[%s954 + $0x1c] sm:$0xf]
            %971 = vst [vmem:[%s955 + $0x1c] sm:$0xf] %v970
            %v972 = vld [vmem:[%s954 + $0x20] sm:$0xf]
            %973 = vst [vmem:[%s955 + $0x20] sm:$0xf] %v972
            %v974 = vld [vmem:[%s954 + $0x24] sm:$0xf]
            %975 = vst [vmem:[%s955 + $0x24] sm:$0xf] %v974
            %v976 = vld [vmem:[%s954 + $0x28] sm:$0xf]
            %977 = vst [vmem:[%s955 + $0x28] sm:$0xf] %v976
            %v978 = vld [vmem:[%s954 + $0x2c] sm:$0xf]
            %979 = vst [vmem:[%s955 + $0x2c] sm:$0xf] %v978
            %v980 = vld [vmem:[%s954 + $0x30] sm:$0xf]
            %981 = vst [vmem:[%s955 + $0x30] sm:$0xf] %v980
            %v982 = vld [vmem:[%s954 + $0x34] sm:$0xf]
            %983 = vst [vmem:[%s955 + $0x34] sm:$0xf] %v982
            %v984 = vld [vmem:[%s954 + $0x38] sm:$0xf]
            %985 = vst [vmem:[%s955 + $0x38] sm:$0xf] %v984
            %v986 = vld [vmem:[%s954 + $0x3c] sm:$0xf]
            %987 = vst [vmem:[%s955 + $0x3c] sm:$0xf] %v986
            %v988 = vld [vmem:[%s954 + $0x40] sm:$0xf]
            %989 = vst [vmem:[%s955 + $0x40] sm:$0xf] %v988
            %v990 = vld [vmem:[%s954 + $0x44] sm:$0xf]
            %991 = vst [vmem:[%s955 + $0x44] sm:$0xf] %v990
            %v992 = vld [vmem:[%s954 + $0x48] sm:$0xf]
            %993 = vst [vmem:[%s955 + $0x48] sm:$0xf] %v992
            %v994 = vld [vmem:[%s954 + $0x4c] sm:$0xf]
            %995 = vst [vmem:[%s955 + $0x4c] sm:$0xf] %v994
            %v996 = vld [vmem:[%s954 + $0x50] sm:$0xf]
            %997 = vst [vmem:[%s955 + $0x50] sm:$0xf] %v996
            %v998 = vld [vmem:[%s954 + $0x54] sm:$0xf]
            %999 = vst [vmem:[%s955 + $0x54] sm:$0xf] %v998
            %v1000 = vld [vmem:[%s954 + $0x58] sm:$0xf]
            %1001 = vst [vmem:[%s955 + $0x58] sm:$0xf] %v1000
            %v1002 = vld [vmem:[%s954 + $0x5c] sm:$0xf]
            %1003 = vst [vmem:[%s955 + $0x5c] sm:$0xf] %v1002
            %v1004 = vld [vmem:[%s954 + $0x60] sm:$0xf]
            %1005 = vst [vmem:[%s955 + $0x60] sm:$0xf] %v1004
          $region54: #{encoder_forward.1} parent=48 // loop_footer
            %s953 = sadd.s32 1, %s949
          $region55: #{encoder_forward.1} parent=48 // loop_footer_branch
            %948 = sbr.rel target = $region51
          $region56: #{encoder_forward.1} parent=48 // loop_exit
            _
        $region49: #{encoder_forward.1} parent=40 // pred_fallthru
          _
      $region41: #{encoder_forward.1} parent=36 // pred_fallthru
        _
      %1075 = vnop
    $region37: #{encoder_forward.1} parent=1 // pred_fallthru
      _
    // Predicated region
    $region75: #{encoder_forward.1} parent=1 // pred_check
      _
    $region76: #{encoder_forward.1} parent=1 // pred_check_branch
      %1077 = sbr.rel (0) target = $region78
    $region77: #{encoder_forward.1} parent=1 // pred_region
      _
    $region78: #{encoder_forward.1} parent=1 // pred_fallthru
      _
    %1078 = vsyncpa [#allocation3], 1

</llo_original>
